<compile_context>
chip_gen: v7x
topology: tpu7x:2x2x1
jax: 0.10.0
libtpu: 0.0.40
codegen_flags: <defaults>
</compile_context>

<pallas_src>
import math
import functools

import jax
import jax.numpy as jnp
from jax import lax
from jax.experimental import pallas as pl
from jax.experimental.pallas import tpu as pltpu


def _round_up(x, m):
    return ((x + m - 1) // m) * m


def _vmem_capacity_bytes():
    """Physical per-core VMEM bytes; conservative 64 MiB (v7x) fallback."""
    try:
        return int(pltpu.get_tpu_info().vmem_capacity_bytes)
    except Exception:
        return 64 * 1024 * 1024


def _lora_kernel(x_ref, a_ref, bt_ref, o_ref):
    """One M-tile of out = x @ A.T @ B.T.

    x_ref : (tm, dim_in)      activation tile (streamed over the grid)
    a_ref : (rank, dim_in)    full lora_A (grid-invariant)
    bt_ref: (rank, dim_out)   full lora_B pre-transposed in the wrapper
    o_ref : (tm, dim_out)     output tile (exact dim_out, masked vst if needed)
    """
    # tmp = x @ A.T : contract the shared dim_in axis directly on the MXU
    # (no `.T` -> no XLU transpose / extra VMEM copy per grid step).
    tmp = lax.dot_general(
        x_ref[...], a_ref[...],
        dimension_numbers=(((1,), (1,)), ((), ())),
        preferred_element_type=jnp.float32,
    )
    # out = tmp @ B.T, kept in f32 (rank is tiny -> negligible MXU cost,
    # avoids bf16 double rounding).
    acc = jnp.dot(tmp, bt_ref[...].astype(jnp.float32),
                  preferred_element_type=jnp.float32)
    o_ref[...] = acc.astype(o_ref.dtype)


def _lora_add_kernel(x_ref, a_ref, bt_ref, base_ref, o_ref):
    """Fused variant: out = base + x @ A.T @ B.T (base aliased to out)."""
    tmp = lax.dot_general(
        x_ref[...], a_ref[...],
        dimension_numbers=(((1,), (1,)), ((), ())),
        preferred_element_type=jnp.float32,
    )
    acc = jnp.dot(tmp, bt_ref[...].astype(jnp.float32),
                  preferred_element_type=jnp.float32)
    o_ref[...] = (base_ref[...].astype(jnp.float32) + acc).astype(o_ref.dtype)


def _choose_tm(m, dim_in, dim_out, itemsize, sublane, vmem_cap, fused):
    """Largest M-tile whose double-buffered streaming operands (x tile,
    out tile, optional base tile) fit a generation-aware tile budget
    (~half of physical VMEM: ~64 MiB on v5e/v6e, ~32 MiB on v7x)."""
    tile_budget = vmem_cap // 2
    tm_cap = 2048 if vmem_cap >= 100 * 1024 * 1024 else 1024
    n_stream_cols = dim_in + dim_out * (2 if fused else 1)
    bytes_per_row = 2 * n_stream_cols * itemsize      # 2x: double buffering
    tm = max(sublane, tile_budget // max(bytes_per_row, 1))
    tm = min(tm, tm_cap)
    tm = (tm // sublane) * sublane
    return max(tm, sublane)


def _fit_tm_to_m(tm, m, sublane):
    """Clamp tm so a block never exceeds the (unpadded) row count."""
    if m <= sublane:
        return m                      # single full-extent block (full-dim exemption)
    tm = min(tm, (m // sublane) * sublane)
    return max(tm, sublane)


@functools.partial(jax.jit, static_argnames=("tm", "core_parallel"))
def lora_forward(x, lora_A, lora_B, base=None, *, tm=None, core_parallel=False):
    """x: (..., dim_in) -> (..., dim_out) via x @ lora_A.T @ lora_B.T.

    If `base` (..., dim_out) is given, the residual add is fused in-kernel:
    out = base + x @ A.T @ B.T  (one fewer HBM pass; base aliased to output).
    Set core_parallel=True on v7x to split the M loop across both TensorCores.
    """
    orig_shape = x.shape
    dim_in = orig_shape[-1]
    rank = lora_A.shape[0]
    dim_out = lora_B.shape[0]

    x2d = x.reshape(-1, dim_in)
    M = x2d.shape[0]
    fused = base is not None

    itemsize = jnp.dtype(x.dtype).itemsize
    # Sublane minimum per dtype: 8 rows for 32-bit, 16 for 16-bit, 32 for 8-bit.
    sublane = 8 * max(1, 4 // itemsize)

    vmem_cap = _vmem_capacity_bytes()

    if tm is None:
        tm = _choose_tm(M, dim_in, dim_out, itemsize, sublane, vmem_cap, fused)
    else:
        tm = max(sublane, (int(tm) // sublane) * sublane)
    tm = _fit_tm_to_m(tm, M, sublane)

    # Pre-transpose B once (outside the kernel) -> (rank, dim_out): the second
    # matmul becomes a plain lane-major GEMM with no in-kernel transpose.
    lora_Bt = lora_B.T

    # Ragged M: cdiv grid + Pallas partial-block masking on the tail tile
    # (no jnp.pad copy of x in HBM -> no extra read+write pass).
    grid = (pl.cdiv(M, tm),)

    x_spec = pl.BlockSpec((tm, dim_in), lambda i: (i, 0))          # streamed
    a_spec = pl.BlockSpec((rank, dim_in), lambda i: (0, 0))        # full A
    bt_spec = pl.BlockSpec((rank, dim_out), lambda i: (0, 0))      # full B.T
    out_spec = pl.BlockSpec((tm, dim_out), lambda i: (i, 0))       # exact dim_out

    # Scoped-VMEM request with real itemsizes; capped at 75% of physical VMEM
    # (never exceeds v7x's 64 MiB per-TC budget), floored at the 32 MiB default.
    a_item = jnp.dtype(lora_A.dtype).itemsize
    b_item = jnp.dtype(lora_Bt.dtype).itemsize
    weight_bytes = 2 * rank * (dim_in * a_item + dim_out * b_item)  # pipeline bufs
    stream_bytes = 2 * tm * (dim_in + dim_out * (2 if fused else 1)) * itemsize
    vmem_need = weight_bytes + stream_bytes
    vmem_limit = int(min(max(vmem_need + 8 * 1024 * 1024, 32 * 1024 * 1024),
                         (3 * vmem_cap) // 4))

    bytes_accessed = (x2d.size * itemsize + lora_A.size * a_item
                      + lora_Bt.size * b_item + M * dim_out * itemsize)
    if fused:
        bytes_accessed += M * dim_out * itemsize
    cost = pl.CostEstimate(
        flops=2 * M * rank * (dim_in + dim_out),
        transcendentals=0,
        bytes_accessed=int(bytes_accessed),
    )

    # "parallel" is safe on all generations; CORE_PARALLEL explicitly splits
    # the M loop across v7x's two TensorCores (opt-in).
    dims_sem = (pltpu.CORE_PARALLEL,) if core_parallel else ("parallel",)
    cparams = pltpu.CompilerParams(
        dimension_semantics=dims_sem,
        vmem_limit_bytes=vmem_limit,
    )

    out_shape = jax.ShapeDtypeStruct((M, dim_out), x.dtype)

    if fused:
        base2d = base.reshape(-1, dim_out).astype(x.dtype)
        base_spec = pl.BlockSpec((tm, dim_out), lambda i: (i, 0))
        out = pl.pallas_call(
            _lora_add_kernel,
            out_shape=out_shape,
            grid_spec=pltpu.PrefetchScalarGridSpec(
                num_scalar_prefetch=0,
                grid=grid,
                in_specs=[x_spec, a_spec, bt_spec, base_spec],
                out_specs=out_spec,
            ),
            compiler_params=cparams,
            cost_estimate=cost,
            input_output_aliases={3: 0},   # base buffer reused as output
        )(x2d, lora_A, lora_Bt, base2d)
    else:
        out = pl.pallas_call(
            _lora_kernel,
            out_shape=out_shape,
            grid_spec=pltpu.PrefetchScalarGridSpec(
                num_scalar_prefetch=0,
                grid=grid,
                in_specs=[x_spec, a_spec, bt_spec],
                out_specs=out_spec,
            ),
            compiler_params=cparams,
            cost_estimate=cost,
        )(x2d, lora_A, lora_Bt)

    return out.reshape(*orig_shape[:-1], dim_out)


def init_lora_params(key, rank, dim_in, dim_out, bias=False):
    """Deterministic init mirroring LoRALayer.__init__:
    lora_A: kaiming_uniform_(a=sqrt(5)) -> Uniform(-1/sqrt(dim_in), 1/sqrt(dim_in))
    lora_B: zeros; lora_b (if bias): zeros (unused in forward, like the PyTorch module).
    """
    bound = 1.0 / math.sqrt(dim_in)  # sqrt(6 / ((1 + 5) * fan_in))
    lora_A = jax.random.uniform(
        key, (rank, dim_in), minval=-bound, maxval=bound, dtype=jnp.float32
    )
    lora_B = jnp.zeros((dim_out, rank), dtype=jnp.float32)
    params = {"lora_A": lora_A, "lora_B": lora_B}
    if bias:
        params["lora_b"] = jnp.zeros((dim_out,), dtype=jnp.float32)
    return params


if __name__ == "__main__":
    key = jax.random.PRNGKey(0)
    kx, ka, kb, kx2, ka2, kb2, kbase = jax.random.split(key, 7)

    # --- test 1: faithful init (lora_B = 0 => exact zeros) -------------------
    batch, seq, dim_in, dim_out, rank = 2, 8, 32, 32, 4
    x = jax.random.normal(kx, (batch, seq, dim_in), dtype=jnp.float32)
    params = init_lora_params(ka, rank, dim_in, dim_out, bias=False)
    out = lora_forward(x, params["lora_A"], params["lora_B"])
    jax.block_until_ready(out)
    ref = x.reshape(-1, dim_in) @ params["lora_A"].T @ params["lora_B"].T
    assert out.shape == (batch, seq, dim_out)
    assert jnp.allclose(out.reshape(-1, dim_out), ref, atol=1e-5)

    # --- test 2: nonzero B, f32 ----------------------------------------------
    B_nonzero = jax.random.normal(kb, (dim_out, rank), dtype=jnp.float32)
    out2 = lora_forward(x, params["lora_A"], B_nonzero)
    jax.block_until_ready(out2)
    ref2 = x.reshape(-1, dim_in) @ params["lora_A"].T @ B_nonzero.T
    assert jnp.allclose(out2.reshape(-1, dim_out), ref2, atol=1e-4, rtol=1e-4)

    # --- test 3: ragged M (15 rows) + non-128 dim_out (masked-store path) ----
    b3, s3, di3, do3, r3 = 3, 5, 48, 40, 4
    x3 = jax.random.normal(kx2, (b3, s3, di3), dtype=jnp.float32)
    A3 = jax.random.normal(ka2, (r3, di3), dtype=jnp.float32) * 0.1
    B3 = jax.random.normal(kb2, (do3, r3), dtype=jnp.float32) * 0.1
    out3 = lora_forward(x3, A3, B3)
    jax.block_until_ready(out3)
    ref3 = x3.reshape(-1, di3) @ A3.T @ B3.T
    assert out3.shape == (b3, s3, do3)
    assert jnp.allclose(out3.reshape(-1, do3), ref3, atol=1e-4, rtol=1e-4)

    # --- test 4: bf16 activations/weights (sublane=16 path) ------------------
    xb = x.astype(jnp.bfloat16)
    Ab = params["lora_A"].astype(jnp.bfloat16)
    Bb = B_nonzero.astype(jnp.bfloat16)
    out4 = lora_forward(xb, Ab, Bb)
    jax.block_until_ready(out4)
    ref4 = (xb.astype(jnp.float32).reshape(-1, dim_in)
            @ Ab.astype(jnp.float32).T @ Bb.astype(jnp.float32).T)
    assert jnp.allclose(out4.reshape(-1, dim_out).astype(jnp.float32), ref4,
                        atol=1e-1, rtol=1e-1)

    # --- test 5: fused residual add (base + LoRA delta, aliased output) ------
    base = jax.random.normal(kbase, (batch, seq, dim_out), dtype=jnp.float32)
    out5 = lora_forward(x, params["lora_A"], B_nonzero, base)
    jax.block_until_ready(out5)
    ref5 = base.reshape(-1, dim_out) + ref2
    assert jnp.allclose(out5.reshape(-1, dim_out), ref5, atol=1e-4, rtol=1e-4)

    print("KERNEL_OK")
</pallas_src>

<mosaic_0001>
module attributes {stable_mosaic.version = 11 : i64} {
  func.func @_lora_kernel(%arg0: i32, %arg1: memref<16x32xf32, #tpu.memory_space<vmem>>, %arg2: memref<4x32xf32, #tpu.memory_space<vmem>>, %arg3: memref<4x32xf32, #tpu.memory_space<vmem>>, %arg4: memref<16x32xf32, #tpu.memory_space<vmem>>) attributes {dimension_semantics = [#tpu.dimension_semantics<parallel>], iteration_bounds = array<i64: 1>, scalar_prefetch = 0 : i64, scratch_operands = 0 : i64, tpu.core_type = #tpu.core_type<tc>, window_params = [{transform_indices = @transform_0, window_bounds = array<i64: 16, 32>}, {pipeline_mode = #tpu.pipeline_mode<synchronous>, transform_indices = @transform_1, window_bounds = array<i64: 4, 32>}, {pipeline_mode = #tpu.pipeline_mode<synchronous>, transform_indices = @transform_2, window_bounds = array<i64: 4, 32>}, {transform_indices = @transform_3, window_bounds = array<i64: 16, 32>}]} {
    %c0 = arith.constant 0 : index
    %c0_0 = arith.constant 0 : index
    %0 = vector.load %arg1[%c0, %c0_0] : memref<16x32xf32, #tpu.memory_space<vmem>>, vector<16x32xf32>
    %c0_1 = arith.constant 0 : index
    %c0_2 = arith.constant 0 : index
    %1 = vector.load %arg2[%c0_1, %c0_2] : memref<4x32xf32, #tpu.memory_space<vmem>>, vector<4x32xf32>
    %cst = arith.constant dense<0.000000e+00> : vector<16x4xf32>
    %2 = tpu.matmul %0, %1, %cst {dimension_numbers = #tpu.dot_dimension_numbers<[1], [1], [0], [0], [0, 0, 1, 0], [], []>} : vector<16x32xf32>, vector<4x32xf32>, vector<16x4xf32> -> vector<16x4xf32>
    %c0_3 = arith.constant 0 : index
    %c0_4 = arith.constant 0 : index
    %3 = vector.load %arg3[%c0_3, %c0_4] : memref<4x32xf32, #tpu.memory_space<vmem>>, vector<4x32xf32>
    %cst_5 = arith.constant dense<0.000000e+00> : vector<16x32xf32>
    %4 = tpu.matmul %2, %3, %cst_5 {dimension_numbers = #tpu.dot_dimension_numbers<[1], [0], [0], [1], [0, 0, 1, 1], [], []>} : vector<16x4xf32>, vector<4x32xf32>, vector<16x32xf32> -> vector<16x32xf32>
    %c0_6 = arith.constant 0 : index
    %c0_7 = arith.constant 0 : index
    %5 = vector.load %arg4[%c0_6, %c0_7] : memref<16x32xf32, #tpu.memory_space<vmem>>, vector<16x32xf32>
    tpu.vector_store %arg4[%c0_6, %c0_7], %4 {strides = array<i32>} : memref<16x32xf32, #tpu.memory_space<vmem>>, vector<16x32xf32>,
    return
  }
  func.func @transform_0(%arg0: i32) -> (i32, i32) {
    %c0_i32 = arith.constant 0 : i32
    %c0_i32_0 = arith.constant 0 : i32
    return %arg0, %c0_i32 : i32, i32
  }
  func.func @transform_1(%arg0: i32) -> (i32, i32) {
    %c0_i32 = arith.constant 0 : i32
    %c0_i32_0 = arith.constant 0 : i32
    %c0_i32_1 = arith.constant 0 : i32
    return %c0_i32, %c0_i32_0 : i32, i32
  }
  func.func @transform_2(%arg0: i32) -> (i32, i32) {
    %c0_i32 = arith.constant 0 : i32
    %c0_i32_0 = arith.constant 0 : i32
    %c0_i32_1 = arith.constant 0 : i32
    return %c0_i32, %c0_i32_0 : i32, i32
  }
  func.func @transform_3(%arg0: i32) -> (i32, i32) {
    %c0_i32 = arith.constant 0 : i32
    %c0_i32_0 = arith.constant 0 : i32
    return %arg0, %c0_i32 : i32, i32
  }
}

</mosaic_0001>

<llo_original>
// kernel: lora_forward.1
$region0: #{lora_forward.1}
  #allocation0 [shape = 'u32[]', space=smem, size = 0x4, offset = 0x4, fixed_abs, tag = 'smem constant byte address 0x4 - core index']
  #allocation1 [shape = 'u32[144,128]{1,0:T(1,128)}', space=vmem, size = 0x12000, scoped, tag = 'internal scratch']
  %s0 = inlined_call_operand.hbm [shape: f32[16,32], index: 0, kind: input, shape index: {}]
  %s1 = inlined_call_operand.vmem [shape: f32[4,32], index: 1, kind: input, shape index: {}]
  %s2 = inlined_call_operand.vmem [shape: f32[4,32], index: 2, kind: input, shape index: {}]
  %s3 = inlined_call_operand.hbm [shape: f32[16,32], index: 3, kind: output, shape index: {}]
  %s4 = sld [smem:[#allocation0]]
  $region26: #{lora_forward.1} parent=0
    _
  %s6 = ssub.s32 1, %s4
  %s7 = scalar_select 0, %s6, %s4
  $region1: #{lora_forward.1} parent=0
    #allocation2 [shape = 'u8[8192]{0}', space=vmem, size = 0x2000, scoped, tag = 'input window, operand 0, single buffered']
    #allocation3 [shape = 's32[1]{0}', space=sflag, size = 0x4, scoped, tag = 'scoped memory for lora_forward.1']
    #allocation4 [shape = 's32[1]{0}', space=sflag, size = 0x4, scoped, tag = 'scoped memory for lora_forward.1']
    #allocation5 [shape = 'u8[8192]{0}', space=vmem, size = 0x2000, scoped, tag = 'output window, operand 0, single buffered']
    %8 = vsyncpa [#allocation3], 0
    %9 = vsyncpa [#allocation4], 0
    // Predicated region
    $region2: #{lora_forward.1} parent=1 // pred_check
      _
    $region3: #{lora_forward.1} parent=1 // pred_check_branch
      %11 = sbr.rel (0) target = $region5
    $region4: #{lora_forward.1} parent=1 // pred_region
      %s13 = ssub.s32 256, 256
      %14 = vsyncadd [#allocation3], %s13
      %s15 = sshll.u32 [#allocation2], 4
      %s16 = int_to_ptr.vmem [resolvable:$true] %s15
      %21 = dma.hbm_to_vmem [thread:$0]  %s0, 256, %s16, [#allocation3], 128, 128, 8
    $region5: #{lora_forward.1} parent=1 // pred_fallthru
      _
    // Predicated region
    $region6: #{lora_forward.1} parent=1 // pred_check
      _
    $region7: #{lora_forward.1} parent=1 // pred_check_branch
      %23 = sbr.rel (0) target = $region9
    $region8: #{lora_forward.1} parent=1 // pred_region
      _
    $region9: #{lora_forward.1} parent=1 // pred_fallthru
      _
    // Predicated region
    $region10: #{lora_forward.1} parent=1 // pred_check
      _
    $region11: #{lora_forward.1} parent=1 // pred_check_branch
      %25 = sbr.rel (0) target = $region13
    $region12: #{lora_forward.1} parent=1 // pred_region
      _
    $region13: #{lora_forward.1} parent=1 // pred_fallthru
      _
    // Predicated region
    $region14: #{lora_forward.1} parent=1 // pred_check
      _
    $region15: #{lora_forward.1} parent=1 // pred_check_branch
      %27 = sbr.rel (0) target = $region17
    $region16: #{lora_forward.1} parent=1 // pred_region
      %28 = dma.done [#allocation3], 256
    $region17: #{lora_forward.1} parent=1 // pred_fallthru
      _
    %v29 = vld [vmem:[#allocation2] sm:$0xff]
    %v30 = vld [vmem:[#allocation2 + $0x8] sm:$0xff]
    %v31 = vld [vmem:[%s1] sm:$0xf]
    %vm32 = vcmask 261120
    %v34 = vsel %vm32, %v29, 0
    %v37 = vsel %vm32, %v30, 0
    %v40 = vsel %vm32, %v31, 0
    %42 = vmatprep.subr.mxu0 0.0
    %43 = vmatpush1.xpose.msra.mxu0 %v40
    %44 = vmatprep.subr.mxu0 0.0
    %45 = vmatpush1.xpose.msra.mxu0 0.0
    %46 = vmatprep.subr.mxu0 0.0
    %47 = vmatpush1.xpose.msra.mxu0 0.0
    %48 = vmatprep.subr.mxu0 0.0
    %49 = vmatpush1.xpose.msra.mxu0 0.0
    %50 = vmatprep.subr.mxu0 0.0
    %51 = vmatpush1.xpose.msra.mxu0 0.0
    %52 = vmatprep.subr.mxu0 0.0
    %53 = vmatpush1.xpose.msra.mxu0 0.0
    %54 = vmatprep.subr.mxu0 0.0
    %55 = vmatpush1.xpose.msra.mxu0 0.0
    %56 = vmatprep.subr.mxu0 0.0
    %57 = vmatpush1.xpose.msra.mxu0 0.0
    %58 = vmatprep.subr.mxu0 0.0
    %59 = vmatpush1.xpose.msra.mxu0 0.0
    %60 = vmatprep.subr.mxu0 0.0
    %61 = vmatpush1.xpose.msra.mxu0 0.0
    %62 = vmatprep.subr.mxu0 0.0
    %63 = vmatpush1.xpose.msra.mxu0 0.0
    %64 = vmatprep.subr.mxu0 0.0
    %65 = vmatpush1.xpose.msra.mxu0 0.0
    %66 = vmatprep.subr.mxu0 0.0
    %67 = vmatpush1.xpose.msra.mxu0 0.0
    %68 = vmatprep.subr.mxu0 0.0
    %69 = vmatpush1.xpose.msra.mxu0 0.0
    %70 = vmatprep.subr.mxu0 0.0
    %71 = vmatpush1.xpose.msra.mxu0 0.0
    %72 = vmatprep.subr.mxu0 0.0
    %73 = vmatpush1.xpose.msra.mxu0 0.0
    %74 = vmatprep.subr.mxu0 0.0
    %75 = vmatpush1.xpose.msra.mxu0 0.0
    %76 = vmatprep.subr.mxu0 0.0
    %77 = vmatpush1.xpose.msra.mxu0 0.0
    %78 = vmatprep.subr.mxu0 0.0
    %79 = vmatpush1.xpose.msra.mxu0 0.0
    %80 = vmatprep.subr.mxu0 0.0
    %81 = vmatpush1.xpose.msra.mxu0 0.0
    %82 = vmatprep.subr.mxu0 0.0
    %83 = vmatpush1.xpose.msra.mxu0 0.0
    %84 = vmatprep.subr.mxu0 0.0
    %85 = vmatpush1.xpose.msra.mxu0 0.0
    %86 = vmatprep.subr.mxu0 0.0
    %87 = vmatpush1.xpose.msra.mxu0 0.0
    %88 = vmatprep.subr.mxu0 0.0
    %89 = vmatpush1.xpose.msra.mxu0 0.0
    %90 = vmatprep.subr.mxu0 0.0
    %91 = vmatpush1.xpose.msra.mxu0 0.0
    %92 = vmatprep.subr.mxu0 0.0
    %93 = vmatpush1.xpose.msra.mxu0 0.0
    %94 = vmatprep.subr.mxu0 0.0
    %95 = vmatpush1.xpose.msra.mxu0 0.0
    %96 = vmatprep.subr.mxu0 0.0
    %97 = vmatpush1.xpose.msra.mxu0 0.0
    %98 = vmatprep.subr.mxu0 0.0
    %99 = vmatpush1.xpose.msra.mxu0 0.0
    %100 = vmatprep.subr.mxu0 0.0
    %101 = vmatpush1.xpose.msra.mxu0 0.0
    %102 = vmatprep.subr.mxu0 0.0
    %103 = vmatpush1.xpose.msra.mxu0 0.0
    %104 = vmatprep.subr.mxu0 0.0
    %105 = vmatpush1.xpose.msra.mxu0 0.0
    %106 = vmatprep.mubr.f32.mxu0 0.0
    %107 = vmatmul.mubr.f32.gmra.mrb[0].mxu0 %v34
    %v108 = vpop.f32.mrb[0].mxu0
    %v109 = vadd.f32 0.0, %v108
    %v110 = vpop.f32.mrb[0].mxu0
    %111 = vmatprep.mubr.f32.mxu0 0.0
    %112 = vmatmul.mubr.f32.gmra.mrb[0].mxu0 %v37
    %v113 = vpop.f32.mrb[0].mxu0
    %v114 = vadd.f32 0.0, %v113
    %v115 = vpop.f32.mrb[0].mxu0
    %116 = vdwg.mxu0
    %v117 = vld [vmem:[%s2] sm:$0xf]
    %vm118 = vcmask 31744
    %v120 = vsel %vm118, %v109, 0
    %v123 = vsel %vm118, %v114, 0
    %vm125 = vcmask 1043456
    %v127 = vsel %vm125, %v117, 0
    %129 = vmatprep.subr.mxu0 0.0
    %130 = vmatpush1.msra.mxu0 %v127
    %131 = vmatprep.subr.mxu0 0.0
    %132 = vmatpush1.msra.mxu0 0.0
    %133 = vmatprep.subr.mxu0 0.0
    %134 = vmatpush1.msra.mxu0 0.0
    %135 = vmatprep.subr.mxu0 0.0
    %136 = vmatpush1.msra.mxu0 0.0
    %137 = vmatprep.subr.mxu0 0.0
    %138 = vmatpush1.msra.mxu0 0.0
    %139 = vmatprep.subr.mxu0 0.0
    %140 = vmatpush1.msra.mxu0 0.0
    %141 = vmatprep.subr.mxu0 0.0
    %142 = vmatpush1.msra.mxu0 0.0
    %143 = vmatprep.subr.mxu0 0.0
    %144 = vmatpush1.msra.mxu0 0.0
    %145 = vmatprep.subr.mxu0 0.0
    %146 = vmatpush1.msra.mxu0 0.0
    %147 = vmatprep.subr.mxu0 0.0
    %148 = vmatpush1.msra.mxu0 0.0
    %149 = vmatprep.subr.mxu0 0.0
    %150 = vmatpush1.msra.mxu0 0.0
    %151 = vmatprep.subr.mxu0 0.0
    %152 = vmatpush1.msra.mxu0 0.0
    %153 = vmatprep.subr.mxu0 0.0
    %154 = vmatpush1.msra.mxu0 0.0
    %155 = vmatprep.subr.mxu0 0.0
    %156 = vmatpush1.msra.mxu0 0.0
    %157 = vmatprep.subr.mxu0 0.0
    %158 = vmatpush1.msra.mxu0 0.0
    %159 = vmatprep.subr.mxu0 0.0
    %160 = vmatpush1.msra.mxu0 0.0
    %161 = vmatprep.subr.mxu0 0.0
    %162 = vmatpush1.msra.mxu0 0.0
    %163 = vmatprep.subr.mxu0 0.0
    %164 = vmatpush1.msra.mxu0 0.0
    %165 = vmatprep.subr.mxu0 0.0
    %166 = vmatpush1.msra.mxu0 0.0
    %167 = vmatprep.subr.mxu0 0.0
    %168 = vmatpush1.msra.mxu0 0.0
    %169 = vmatprep.subr.mxu0 0.0
    %170 = vmatpush1.msra.mxu0 0.0
    %171 = vmatprep.subr.mxu0 0.0
    %172 = vmatpush1.msra.mxu0 0.0
    %173 = vmatprep.subr.mxu0 0.0
    %174 = vmatpush1.msra.mxu0 0.0
    %175 = vmatprep.subr.mxu0 0.0
    %176 = vmatpush1.msra.mxu0 0.0
    %177 = vmatprep.subr.mxu0 0.0
    %178 = vmatpush1.msra.mxu0 0.0
    %179 = vmatprep.subr.mxu0 0.0
    %180 = vmatpush1.msra.mxu0 0.0
    %181 = vmatprep.subr.mxu0 0.0
    %182 = vmatpush1.msra.mxu0 0.0
    %183 = vmatprep.subr.mxu0 0.0
    %184 = vmatpush1.msra.mxu0 0.0
    %185 = vmatprep.subr.mxu0 0.0
    %186 = vmatpush1.msra.mxu0 0.0
    %187 = vmatprep.subr.mxu0 0.0
    %188 = vmatpush1.msra.mxu0 0.0
    %189 = vmatprep.subr.mxu0 0.0
    %190 = vmatpush1.msra.mxu0 0.0
    %191 = vmatprep.subr.mxu0 0.0
    %192 = vmatpush1.msra.mxu0 0.0
    %193 = vmatprep.mubr.f32.mxu0 0.0
    %194 = vmatmul.mubr.f32.gmra.mrb[0].mxu0 %v120
    %v195 = vpop.f32.mrb[0].mxu0
    %v196 = vadd.f32 0.0, %v195
    %v197 = vpop.f32.mrb[0].mxu0
    %198 = vmatprep.mubr.f32.mxu0 0.0
    %199 = vmatmul.mubr.f32.gmra.mrb[0].mxu0 %v123
    %v200 = vpop.f32.mrb[0].mxu0
    %v201 = vadd.f32 0.0, %v200
    %v202 = vpop.f32.mrb[0].mxu0
    %203 = vdwg.mxu0
    %204 = vst.msk [vmem:[#allocation5] sm:$0xff] %vm32, %v196
    %205 = vst.msk [vmem:[#allocation5 + $0x8] sm:$0xff] %vm32, %v201
    // Predicated region
    $region18: #{lora_forward.1} parent=1 // pred_check
      _
    $region19: #{lora_forward.1} parent=1 // pred_check_branch
      %207 = sbr.rel (0) target = $region21
    $region20: #{lora_forward.1} parent=1 // pred_region
      %s209 = ssub.s32 256, 256
      %210 = vsyncadd [#allocation4], %s209
      %s211 = sshll.u32 [#allocation5], 4
      %s212 = int_to_ptr.vmem [resolvable:$true] %s211
      %217 = dma.vmem_to_hbm [thread:$0]  %s212, 256, %s3, [#allocation4], 128, 128, 8
    $region21: #{lora_forward.1} parent=1 // pred_fallthru
      _
    // Predicated region
    $region22: #{lora_forward.1} parent=1 // pred_check
      _
    $region23: #{lora_forward.1} parent=1 // pred_check_branch
      %219 = sbr.rel (0) target = $region25
    $region24: #{lora_forward.1} parent=1 // pred_region
      %220 = dma.done [#allocation4], 256
    $region25: #{lora_forward.1} parent=1 // pred_fallthru
      _
    %221 = vsyncpa [#allocation3], 1
    %222 = vsyncpa [#allocation4], 1

</llo_original>
